<compile_context>
chip_gen: v5e
topology: v5e:2x2
jax: 0.10.0
libtpu: 0.0.40
codegen_flags: <defaults>
</compile_context>

<pallas_src>
import functools

import jax
import jax.numpy as jnp
from jax import lax
from jax.experimental import pallas as pl
from jax.experimental.pallas import tpu as pltpu


def _round_up(n, m):
    return ((n + m - 1) // m) * m


_MAX_TS = 2048        # max rows of x per sequence chunk
_TARGET_ROWS = 1024   # target effective matmul M rows per grid step (v6e tile-sweep sweet spot)


def _convnet_kernel(x_ref, wc_ref, bc_ref, wl_ref, bl_ref, out_ref,
                    mmax_ref, carry_ref, *, ts, L, nc, needs_mask):
    """One (TB batch, TS sequence-rows) tile per grid step.

    Grid = (batch_tiles [parallel], seq_chunks [arbitrary / reduction]).

    x_ref    : (TB, TS, Cin)   activation chunk (compute dtype, e.g. bf16)
    wc_ref   : (3, Cin, Cout)  conv weight, tap-major (resident: constant index_map)
    bc_ref   : (1, Cout) f32   conv bias (added after the max: max(a)+b == max(a+b))
    wl_ref   : (Cout, Cout)    linear weight stored (in, out) == torch W.T
    bl_ref   : (1, Cout) f32   linear bias
    out_ref  : (TB, Cout) f32  sigmoid(linear(relu(maxpool(conv))))
    mmax_ref : (TB, Cout) f32  running max over conv positions (scratch)
    carry_ref: (TB, 2, Cin)    last two x rows of the previous chunk (scratch)
    """
    j = pl.program_id(1)
    tsm2 = ts - 2

    @pl.when(j == 0)
    def _init():
        mmax_ref[...] = jnp.full_like(mmax_ref, -jnp.inf)

    x = x_ref[...]                     # (TB, TS, Cin) compute dtype
    w = wc_ref[...]                    # (3, Cin, Cout)

    def conv3(xs):
        # xs: (TB, n+2, Cin) -> valid conv outputs (TB, n, Cout), f32 accumulation.
        b, m, _ = xs.shape
        n = m - 2
        x2 = xs.reshape(b * m, xs.shape[-1])           # single lane-minor 2D slab
        ys = [jnp.dot(x2, w[k], preferred_element_type=jnp.float32).reshape(b, m, -1)
              for k in range(3)]                        # three MXU dots, shared LHS
        return ys[0][:, 0:n, :] + ys[1][:, 1:n + 1, :] + ys[2][:, 2:n + 2, :]

    # Conv outputs fully contained in this chunk: global positions j*ts + [0, ts-2).
    conv = conv3(x)                                     # (TB, ts-2, Cout) f32
    if needs_mask:
        row = lax.broadcasted_iota(jnp.int32, (tsm2, 1), 0)
        conv = jnp.where(row + j * ts < L, conv, -jnp.inf)
    mmax_ref[...] = jnp.maximum(mmax_ref[...], jnp.max(conv, axis=1))

    if nc > 1:
        # Positions straddling the previous chunk boundary: j*ts - 2 and j*ts - 1.
        @pl.when(j > 0)
        def _boundary():
            xb = jnp.concatenate([carry_ref[...], x[:, 0:2, :]], axis=1)  # (TB, 4, Cin)
            cb = conv3(xb)                                                 # (TB, 2, Cout)
            if needs_mask:
                row = lax.broadcasted_iota(jnp.int32, (2, 1), 0)
                cb = jnp.where(row + j * ts - 2 < L, cb, -jnp.inf)
            mmax_ref[...] = jnp.maximum(mmax_ref[...], jnp.max(cb, axis=1))

        # Stash this chunk's last two rows for the next chunk's boundary conv.
        @pl.when(j < nc - 1)
        def _stash():
            carry_ref[...] = x[:, tsm2:ts, :]

    @pl.when(j == nc - 1)
    def _finalize():
        pooled = jnp.maximum(mmax_ref[...] + bc_ref[...], 0.0)            # (TB, Cout) f32
        logits = jnp.dot(pooled, wl_ref[...].astype(jnp.float32),
                         preferred_element_type=jnp.float32) + bl_ref[...]
        out_ref[...] = jax.nn.sigmoid(logits).astype(out_ref.dtype)


@functools.partial(jax.jit, static_argnames=("ts", "compute_dtype"))
def convnet_forward(x, w_conv, b_conv, w_lin, b_lin, *, ts=None,
                    compute_dtype=jnp.bfloat16):
    """x: (B, S, Cin); w_conv: (3, Cin, Cout) tap-major (torch conv weight (Cout, Cin, 3)
    transposed); b_conv: (1, Cout); w_lin: (Cout, Cout) stored (in, out) == torch W.T;
    b_lin: (1, Cout). Returns (B, Cout) float32."""
    B, S, Cin = x.shape
    Cout = w_conv.shape[2]
    assert S >= 3
    L = S - 2                                  # valid conv length (kernel_size=3)

    cd_size = jnp.dtype(compute_dtype).itemsize
    row_bytes = max(Cin * cd_size, 1)

    # ---- tiling ------------------------------------------------------------
    # Sequence chunk: keep one (TB, TS, Cin) tile around ~2 MiB so a 3-deep buffered
    # pipeline stays far below v7x's 64 MiB physical VMEM.
    auto_ts = max(8, min(_MAX_TS, ((2 << 20) // (8 * row_bytes)) // 8 * 8))
    if ts is None:
        ts_eff = S if S <= auto_ts else auto_ts
    else:
        ts_eff = min(_round_up(ts, 8), S)      # non-full chunk dim must be 8-aligned
    if ts_eff >= S:
        ts_eff, nc = S, 1
    else:
        nc = pl.cdiv(S, ts_eff)
    s_pad = nc * ts_eff
    needs_mask = s_pad > S                     # padded rows must never win the max

    # Batch tile: multiple of 8 sublanes, ~1024 effective M rows per step, and at
    # least 2 parallel grid steps so both v7x TensorCores get work (no-op on v5e/v6e).
    tb = _round_up(min(max(_TARGET_ROWS // max(ts_eff, 1), 1), B), 8)
    if pl.cdiv(B, tb) < 2 and tb > 8:
        tb = max(8, _round_up(pl.cdiv(B, 2), 8))
    nb = max(2, pl.cdiv(B, tb))
    b_pad = nb * tb

    # ---- wrapper-side plumbing (no im2col, no lane padding in HBM) ----------
    # TODO(synk): in a full model, fuse this bf16 cast into the producer of x instead
    # of a standalone convert pass.
    xc = x.astype(compute_dtype)
    if b_pad != B or s_pad != S:
        xc = jnp.pad(xc, ((0, b_pad - B), (0, s_pad - S), (0, 0)))
    wc = w_conv.astype(compute_dtype)
    wl = w_lin.astype(compute_dtype)
    bc = b_conv.astype(jnp.float32).reshape(1, Cout)
    bl = b_lin.astype(jnp.float32).reshape(1, Cout)

    cost = pl.CostEstimate(
        flops=2 * B * L * (3 * Cin) * Cout + 2 * B * Cout * Cout,
        transcendentals=B * Cout,
        bytes_accessed=(xc.size + wc.size + wl.size) * cd_size
        + (bc.size + bl.size) * 4 + b_pad * Cout * 4,
    )

    if nc > 1:
        # chunk loop is DMA-latency bound (tiny per-chunk compute) -> deeper pipeline
        x_spec = pl.BlockSpec((tb, ts_eff, Cin), lambda b, j: (b, j, 0),
                              pipeline_mode=pl.Buffered(3))
    else:
        x_spec = pl.BlockSpec((tb, ts_eff, Cin), lambda b, j: (b, j, 0))

    kernel = functools.partial(_convnet_kernel, ts=ts_eff, L=L, nc=nc,
                               needs_mask=needs_mask)

    out = pl.pallas_call(
        kernel,
        out_shape=jax.ShapeDtypeStruct((b_pad, Cout), jnp.float32),
        grid_spec=pltpu.PrefetchScalarGridSpec(
            num_scalar_prefetch=0,
            grid=(nb, nc),
            in_specs=[
                x_spec,
                pl.BlockSpec((3, Cin, Cout), lambda b, j: (0, 0, 0)),  # weights stay resident
                pl.BlockSpec((1, Cout), lambda b, j: (0, 0)),
                pl.BlockSpec((Cout, Cout), lambda b, j: (0, 0)),
                pl.BlockSpec((1, Cout), lambda b, j: (0, 0)),
            ],
            out_specs=pl.BlockSpec((tb, Cout), lambda b, j: (b, 0)),
            scratch_shapes=[
                pltpu.VMEM((tb, Cout), jnp.float32),      # running max accumulator
                pltpu.VMEM((tb, 2, Cin), compute_dtype),  # boundary carry rows
            ],
        ),
        compiler_params=pltpu.CompilerParams(
            dimension_semantics=("parallel", "arbitrary"),
            vmem_limit_bytes=32 * 1024 * 1024,   # tiles sized well below v7x's 64 MiB VMEM
        ),
        cost_estimate=cost,
    )(xc, wc, bc, wl, bl)

    return out[:B]


def _reference(x, w_conv, b_conv, w_lin, b_lin):
    # Plain-JAX f32 reference mirroring the torch forward.
    B, S, Cin = x.shape
    L = S - 2
    conv = sum(jnp.einsum('blc,co->blo', x[:, k:k + L, :], w_conv[k])
               for k in range(3)) + b_conv                     # (B, L, Cout)
    pooled = jnp.maximum(jnp.max(conv, axis=1), 0.0)
    return jax.nn.sigmoid(pooled @ w_lin + b_lin)


if __name__ == "__main__":
    key = jax.random.PRNGKey(0)

    def make_case(k, batch, seq_len, input_dim, output_dim):
        kx, kwc, kbc, kwl, kbl = jax.random.split(k, 5)
        x = jax.random.normal(kx, (batch, seq_len, input_dim), jnp.float32)
        # torch conv weight is (C_out, C_in, 3); stored tap-major (3, C_in, C_out).
        w_conv = jax.random.normal(kwc, (3, input_dim, output_dim), jnp.float32) * 0.2
        b_conv = jax.random.normal(kbc, (1, output_dim), jnp.float32) * 0.1
        # torch linear weight is (out, in); stored transposed (in, out).
        w_lin = jax.random.normal(kwl, (output_dim, output_dim), jnp.float32) * 0.2
        b_lin = jax.random.normal(kbl, (1, output_dim), jnp.float32) * 0.1
        return x, w_conv, b_conv, w_lin, b_lin

    k1, k2 = jax.random.split(key)

    # Case 1: module-spec shapes (single-chunk path, 2 parallel batch steps).
    batch, seq_len, input_dim, output_dim = 2, 8, 4, 32
    args = make_case(k1, batch, seq_len, input_dim, output_dim)
    out = jax.block_until_ready(convnet_forward(*args))
    ref = _reference(*args)
    assert out.shape == (batch, output_dim)
    err = float(jnp.max(jnp.abs(out - ref)))
    assert jnp.allclose(out, ref, atol=2e-2, rtol=2e-2), err

    # Case 2: longer sequence exercising the chunked running-max + boundary-carry path.
    args2 = make_case(k2, 4, 40, 4, 32)
    out2 = jax.block_until_ready(convnet_forward(*args2, ts=16))
    ref2 = _reference(*args2)
    assert out2.shape == (4, 32)
    err2 = float(jnp.max(jnp.abs(out2 - ref2)))
    assert jnp.allclose(out2, ref2, atol=2e-2, rtol=2e-2), err2

    print("KERNEL_OK")
</pallas_src>

<mosaic_0001>
module attributes {stable_mosaic.version = 11 : i64} {
  func.func @_convnet_kernel(%arg0: i32, %arg1: i32, %arg2: memref<8x8x4xbf16, #tpu.memory_space<vmem>>, %arg3: memref<3x4x32xbf16, #tpu.memory_space<vmem>>, %arg4: memref<1x32xf32, #tpu.memory_space<vmem>>, %arg5: memref<32x32xbf16, #tpu.memory_space<vmem>>, %arg6: memref<1x32xf32, #tpu.memory_space<vmem>>, %arg7: memref<8x32xf32, #tpu.memory_space<vmem>>, %arg8: memref<8x32xf32, #tpu.memory_space<vmem>>, %arg9: memref<8x2x4xbf16, #tpu.memory_space<vmem>>) attributes {dimension_semantics = [#tpu.dimension_semantics<parallel>, #tpu.dimension_semantics<arbitrary>], iteration_bounds = array<i64: 2, 1>, scalar_prefetch = 0 : i64, scratch_operands = 2 : i64, tpu.core_type = #tpu.core_type<tc>, window_params = [{transform_indices = @transform_0, window_bounds = array<i64: 8, 8, 4>}, {pipeline_mode = #tpu.pipeline_mode<synchronous>, transform_indices = @transform_1, window_bounds = array<i64: 3, 4, 32>}, {pipeline_mode = #tpu.pipeline_mode<synchronous>, transform_indices = @transform_2, window_bounds = array<i64: 1, 32>}, {pipeline_mode = #tpu.pipeline_mode<synchronous>, transform_indices = @transform_3, window_bounds = array<i64: 32, 32>}, {pipeline_mode = #tpu.pipeline_mode<synchronous>, transform_indices = @transform_4, window_bounds = array<i64: 1, 32>}, {transform_indices = @transform_5, window_bounds = array<i64: 8, 32>}]} {
    %c0_i32 = arith.constant 0 : i32
    %0 = arith.cmpi eq, %arg1, %c0_i32 : i32
    %1 = arith.extui %0 : i1 to i32
    %c0_i32_0 = arith.constant 0 : i32
    %2 = arith.cmpi ne, %1, %c0_i32_0 : i32
    scf.if %2 {
      %cst_15 = arith.constant 0xFF800000 : f32
      %30 = vector.broadcast %cst_15 : f32 to vector<8x32xf32>
      %c0_16 = arith.constant 0 : index
      %c0_17 = arith.constant 0 : index
      %31 = vector.load %arg8[%c0_16, %c0_17] : memref<8x32xf32, #tpu.memory_space<vmem>>, vector<8x32xf32>
      tpu.vector_store %arg8[%c0_16, %c0_17], %30 {strides = array<i32>} : memref<8x32xf32, #tpu.memory_space<vmem>>, vector<8x32xf32>,
    } else {
    }
    %c0 = arith.constant 0 : index
    %c0_1 = arith.constant 0 : index
    %c0_2 = arith.constant 0 : index
    %3 = vector.load %arg2[%c0, %c0_1, %c0_2] : memref<8x8x4xbf16, #tpu.memory_space<vmem>>, vector<8x8x4xbf16>
    %c0_3 = arith.constant 0 : index
    %c0_4 = arith.constant 0 : index
    %c0_5 = arith.constant 0 : index
    %4 = vector.load %arg3[%c0_3, %c0_4, %c0_5] : memref<3x4x32xbf16, #tpu.memory_space<vmem>>, vector<3x4x32xbf16>
    %5 = vector.shape_cast %3 : vector<8x8x4xbf16> to vector<64x4xbf16>
    %6 = vector.extract_strided_slice %4 {offsets = [0, 0, 0], sizes = [1, 4, 32], strides = [1, 1, 1]} : vector<3x4x32xbf16> to vector<1x4x32xbf16>
    %7 = vector.shape_cast %6 : vector<1x4x32xbf16> to vector<4x32xbf16>
    %cst = arith.constant dense<0.000000e+00> : vector<64x32xf32>
    %8 = tpu.matmul %5, %7, %cst {dimension_numbers = #tpu.dot_dimension_numbers<[1], [0], [0], [1], [0, 0, 1, 1], [], []>} : vector<64x4xbf16>, vector<4x32xbf16>, vector<64x32xf32> -> vector<64x32xf32>
    %9 = vector.shape_cast %8 : vector<64x32xf32> to vector<8x8x32xf32>
    %10 = vector.extract_strided_slice %4 {offsets = [1, 0, 0], sizes = [1, 4, 32], strides = [1, 1, 1]} : vector<3x4x32xbf16> to vector<1x4x32xbf16>
    %11 = vector.shape_cast %10 : vector<1x4x32xbf16> to vector<4x32xbf16>
    %cst_6 = arith.constant dense<0.000000e+00> : vector<64x32xf32>
    %12 = tpu.matmul %5, %11, %cst_6 {dimension_numbers = #tpu.dot_dimension_numbers<[1], [0], [0], [1], [0, 0, 1, 1], [], []>} : vector<64x4xbf16>, vector<4x32xbf16>, vector<64x32xf32> -> vector<64x32xf32>
    %13 = vector.shape_cast %12 : vector<64x32xf32> to vector<8x8x32xf32>
    %14 = vector.extract_strided_slice %4 {offsets = [2, 0, 0], sizes = [1, 4, 32], strides = [1, 1, 1]} : vector<3x4x32xbf16> to vector<1x4x32xbf16>
    %15 = vector.shape_cast %14 : vector<1x4x32xbf16> to vector<4x32xbf16>
    %cst_7 = arith.constant dense<0.000000e+00> : vector<64x32xf32>
    %16 = tpu.matmul %5, %15, %cst_7 {dimension_numbers = #tpu.dot_dimension_numbers<[1], [0], [0], [1], [0, 0, 1, 1], [], []>} : vector<64x4xbf16>, vector<4x32xbf16>, vector<64x32xf32> -> vector<64x32xf32>
    %17 = vector.shape_cast %16 : vector<64x32xf32> to vector<8x8x32xf32>
    %18 = vector.extract_strided_slice %9 {offsets = [0, 0, 0], sizes = [8, 6, 32], strides = [1, 1, 1]} : vector<8x8x32xf32> to vector<8x6x32xf32>
    %19 = vector.extract_strided_slice %13 {offsets = [0, 1, 0], sizes = [8, 6, 32], strides = [1, 1, 1]} : vector<8x8x32xf32> to vector<8x6x32xf32>
    %20 = arith.addf %18, %19 : vector<8x6x32xf32>
    %21 = vector.extract_strided_slice %17 {offsets = [0, 2, 0], sizes = [8, 6, 32], strides = [1, 1, 1]} : vector<8x8x32xf32> to vector<8x6x32xf32>
    %22 = arith.addf %20, %21 : vector<8x6x32xf32>
    %c0_8 = arith.constant 0 : index
    %c0_9 = arith.constant 0 : index
    %23 = vector.load %arg8[%c0_8, %c0_9] : memref<8x32xf32, #tpu.memory_space<vmem>>, vector<8x32xf32>
    %cst_10 = arith.constant dense<0xFF800000> : vector<8x32xf32>
    %24 = vector.multi_reduction <maximumf>, %22, %cst_10 [1] : vector<8x6x32xf32> to vector<8x32xf32>
    %25 = arith.maximumf %23, %24 : vector<8x32xf32>
    %c0_11 = arith.constant 0 : index
    %c0_12 = arith.constant 0 : index
    %26 = vector.load %arg8[%c0_11, %c0_12] : memref<8x32xf32, #tpu.memory_space<vmem>>, vector<8x32xf32>
    tpu.vector_store %arg8[%c0_11, %c0_12], %25 {strides = array<i32>} : memref<8x32xf32, #tpu.memory_space<vmem>>, vector<8x32xf32>,
    %c0_i32_13 = arith.constant 0 : i32
    %27 = arith.cmpi eq, %arg1, %c0_i32_13 : i32
    %28 = arith.extui %27 : i1 to i32
    %c0_i32_14 = arith.constant 0 : i32
    %29 = arith.cmpi ne, %28, %c0_i32_14 : i32
    scf.if %29 {
      %c0_15 = arith.constant 0 : index
      %c0_16 = arith.constant 0 : index
      %30 = vector.load %arg8[%c0_15, %c0_16] : memref<8x32xf32, #tpu.memory_space<vmem>>, vector<8x32xf32>
      %c0_17 = arith.constant 0 : index
      %c0_18 = arith.constant 0 : index
      %31 = vector.load %arg4[%c0_17, %c0_18] : memref<1x32xf32, #tpu.memory_space<vmem>>, vector<1x32xf32>
      %32 = vector.broadcast %31 : vector<1x32xf32> to vector<8x32xf32>
      %33 = arith.addf %30, %32 : vector<8x32xf32>
      %cst_19 = arith.constant 0.000000e+00 : f32
      %34 = vector.broadcast %cst_19 : f32 to vector<8x32xf32>
      %35 = arith.maximumf %33, %34 : vector<8x32xf32>
      %c0_20 = arith.constant 0 : index
      %c0_21 = arith.constant 0 : index
      %36 = vector.load %arg5[%c0_20, %c0_21] : memref<32x32xbf16, #tpu.memory_space<vmem>>, vector<32x32xbf16>
      %37 = arith.extf %36 : vector<32x32xbf16> to vector<32x32xf32>
      %cst_22 = arith.constant dense<0.000000e+00> : vector<8x32xf32>
      %38 = tpu.matmul %35, %37, %cst_22 {dimension_numbers = #tpu.dot_dimension_numbers<[1], [0], [0], [1], [0, 0, 1, 1], [], []>} : vector<8x32xf32>, vector<32x32xf32>, vector<8x32xf32> -> vector<8x32xf32>
      %c0_23 = arith.constant 0 : index
      %c0_24 = arith.constant 0 : index
      %39 = vector.load %arg6[%c0_23, %c0_24] : memref<1x32xf32, #tpu.memory_space<vmem>>, vector<1x32xf32>
      %40 = vector.broadcast %39 : vector<1x32xf32> to vector<8x32xf32>
      %41 = arith.addf %38, %40 : vector<8x32xf32>
      %42 = arith.negf %41 : vector<8x32xf32>
      %43 = math.exp %42 : vector<8x32xf32>
      %cst_25 = arith.constant 1.000000e+00 : f32
      %44 = vector.broadcast %cst_25 : f32 to vector<8x32xf32>
      %45 = arith.addf %44, %43 : vector<8x32xf32>
      %46 = arith.divf %44, %45 : vector<8x32xf32>
      %c0_26 = arith.constant 0 : index
      %c0_27 = arith.constant 0 : index
      %47 = vector.load %arg7[%c0_26, %c0_27] : memref<8x32xf32, #tpu.memory_space<vmem>>, vector<8x32xf32>
      tpu.vector_store %arg7[%c0_26, %c0_27], %46 {strides = array<i32>} : memref<8x32xf32, #tpu.memory_space<vmem>>, vector<8x32xf32>,
    } else {
    }
    return
  }
  func.func @transform_0(%arg0: i32, %arg1: i32) -> (i32, i32, i32) {
    %c0_i32 = arith.constant 0 : i32
    %c0_i32_0 = arith.constant 0 : i32
    return %arg0, %arg1, %c0_i32 : i32, i32, i32
  }
  func.func @transform_1(%arg0: i32, %arg1: i32) -> (i32, i32, i32) {
    %c0_i32 = arith.constant 0 : i32
    %c0_i32_0 = arith.constant 0 : i32
    %c0_i32_1 = arith.constant 0 : i32
    %c0_i32_2 = arith.constant 0 : i32
    return %c0_i32, %c0_i32_0, %c0_i32_1 : i32, i32, i32
  }
  func.func @transform_2(%arg0: i32, %arg1: i32) -> (i32, i32) {
    %c0_i32 = arith.constant 0 : i32
    %c0_i32_0 = arith.constant 0 : i32
    %c0_i32_1 = arith.constant 0 : i32
    return %c0_i32, %c0_i32_0 : i32, i32
  }
  func.func @transform_3(%arg0: i32, %arg1: i32) -> (i32, i32) {
    %c0_i32 = arith.constant 0 : i32
    %c0_i32_0 = arith.constant 0 : i32
    %c0_i32_1 = arith.constant 0 : i32
    return %c0_i32, %c0_i32_0 : i32, i32
  }
  func.func @transform_4(%arg0: i32, %arg1: i32) -> (i32, i32) {
    %c0_i32 = arith.constant 0 : i32
    %c0_i32_0 = arith.constant 0 : i32
    %c0_i32_1 = arith.constant 0 : i32
    return %c0_i32, %c0_i32_0 : i32, i32
  }
  func.func @transform_5(%arg0: i32, %arg1: i32) -> (i32, i32) {
    %c0_i32 = arith.constant 0 : i32
    %c0_i32_0 = arith.constant 0 : i32
    return %arg0, %c0_i32 : i32, i32
  }
}

</mosaic_0001>

<llo_original>
// kernel: convnet_forward.1
$region0: #{convnet_forward.1}
  #allocation0 [shape = 'u32[]', space=smem, size = 0x4, offset = 0x4, fixed_abs, tag = 'smem constant byte address 0x4 - core index']
  #allocation1 [shape = 'u32[72,128]{1,0:T(1,128)}', space=vmem, size = 0x9000, scoped, tag = 'internal scratch']
  #allocation2 [shape = 'f32[8,32]{1,0:T(8,128)}', space=vmem, size = 0x1000, scoped, tag = 'scratch operand']
  #allocation3 [shape = 'bf16[8,2,4]{2,1,0:T(2,128)(2,1)}', space=vmem, size = 0x1000, scoped, tag = 'scratch operand']
  %s0 = inlined_call_operand.vmem [shape: bf16[16,8,4], index: 0, kind: input, shape index: {}]
  %s1 = inlined_call_operand.vmem [shape: bf16[3,4,32], index: 1, kind: input, shape index: {}]
  %s2 = inlined_call_operand.vmem [shape: f32[1,32], index: 2, kind: input, shape index: {}]
  %s3 = inlined_call_operand.vmem [shape: bf16[32,32], index: 3, kind: input, shape index: {}]
  %s4 = inlined_call_operand.vmem [shape: f32[1,32], index: 4, kind: input, shape index: {}]
  %s5 = inlined_call_operand.vmem [shape: f32[16,32], index: 5, kind: output, shape index: {}]
  %s6 = sld [smem:[#allocation0]]
  $region61: #{convnet_forward.1} parent=0
    _
  %s8 = ssub.s32 1, %s6
  %s9 = scalar_select 0, %s8, %s6
  loop: start=0, step=1, limit=4
  $region2: #{convnet_forward.1} parent=0 // loop_pre_header
    _
  $region3: #{convnet_forward.1} parent=0 // loop_header
    %s11 = sphi 0, %s15
    %p12 = scmp.ge.s32.totalorder %s11, 4
    %s18 = sphi 0, %s30
    %s19 = sphi 0, %s26
    %s20 = sphi 0, %s18
    %s21 = sphi 0, %s19
    %s22 = sphi 0, %s20
    %s23 = sphi 0, %s21
    %s35 = sphi 0, %s37
    %s38 = sphi 0, %s35
    %s39 = sphi 0, %s38
    %s55 = sphi 0, %s39
    %s59 = sphi 0, %s59
    %s61 = sphi 0, %s59
    %s62 = sphi 0, %s61
    %s76 = sphi 0, %s62
    %s80 = sphi 0, %s80
    %s82 = sphi 0, %s80
    %s83 = sphi 0, %s82
    %s97 = sphi 0, %s83
    %s101 = sphi 0, %s101
    %s103 = sphi 0, %s101
    %s104 = sphi 0, %s103
    %s118 = sphi 0, %s104
    %s122 = sphi 0, %s122
    %s124 = sphi 0, %s122
    %s125 = sphi 0, %s124
    %s139 = sphi 0, %s125
    %s145 = sphi 0, %s147
    %s148 = sphi 0, %s145
    %s149 = sphi 0, %s148
    %s165 = sphi 0, %s149
  $region4: #{convnet_forward.1} parent=0 // loop_header_branch
    %14 = sbr.rel (%p12) target = $region8
  $region5: #{convnet_forward.1} parent=0 // loop_body
    %s16 = ssub.s32 %s11, 1
    %s17 = ssub.s32 %s11, 2
    %s24 = sadd.s32 1, %s19
    %p25 = scmp.ge.s32.totalorder %s24, 1
    %s26 = scalar_select %p25, 0, %s24
    %s27 = sadd.s32 1, %s18
    %s28 = scalar_select %p25, %s27, %s18
    %p29 = scmp.ge.s32.totalorder %s28, 2
    %s30 = scalar_select %p29, 0, %s28
    %s31 = ssub.s32 %s18, %s30
    %s32 = ssub.s32 %s19, %s26
    %s33 = sor.u32 %s31, %s32
    %p34 = scmp.eq.s32.totalorder %s33, 0
    %s36 = sadd.s32 %s35, 1
    %s37 = scalar_select %p34, %s35, %s36
    %p40 = pneg %p34
    %p41 = scmp.eq.s32.totalorder %s11, 1
    %p42 = por %p40, %p41
    %p43 = scmp.ne.s32.totalorder %s35, %s38
    %p44 = scmp.eq.s32.totalorder %s11, 0
    %p45 = por %p43, %p44
    %p46 = scmp.ne.s32.totalorder %s35, %s38
    %p47 = scmp.eq.s32.totalorder %s16, 1
    %p48 = por %p46, %p47
    %p49 = scmp.ne.s32.totalorder %s38, %s39
    %p50 = scmp.eq.s32.totalorder %s16, 0
    %p51 = por %p49, %p50
    %p52 = scmp.ne.s32.totalorder %s38, %s39
    %p53 = scmp.eq.s32.totalorder %s17, 1
    %p54 = por %p52, %p53
    %p56 = scmp.ne.s32.totalorder %s39, %s55
    %p57 = scmp.eq.s32.totalorder %s17, 0
    %p58 = por %p56, %p57
    %s60 = sadd.s32 %s59, 1
    %p63 = scmp.eq.s32.totalorder %s11, 1
    %p64 = scmp.ne.s32.totalorder %s59, %s61
    %p65 = scmp.eq.s32.totalorder %s11, 0
    %p66 = por %p64, %p65
    %p67 = scmp.ne.s32.totalorder %s59, %s61
    %p68 = scmp.eq.s32.totalorder %s16, 1
    %p69 = por %p67, %p68
    %p70 = scmp.ne.s32.totalorder %s61, %s62
    %p71 = scmp.eq.s32.totalorder %s16, 0
    %p72 = por %p70, %p71
    %p73 = scmp.ne.s32.totalorder %s61, %s62
    %p74 = scmp.eq.s32.totalorder %s17, 1
    %p75 = por %p73, %p74
    %p77 = scmp.ne.s32.totalorder %s62, %s76
    %p78 = scmp.eq.s32.totalorder %s17, 0
    %p79 = por %p77, %p78
    %s81 = sadd.s32 %s80, 1
    %p84 = scmp.eq.s32.totalorder %s11, 1
    %p85 = scmp.ne.s32.totalorder %s80, %s82
    %p86 = scmp.eq.s32.totalorder %s11, 0
    %p87 = por %p85, %p86
    %p88 = scmp.ne.s32.totalorder %s80, %s82
    %p89 = scmp.eq.s32.totalorder %s16, 1
    %p90 = por %p88, %p89
    %p91 = scmp.ne.s32.totalorder %s82, %s83
    %p92 = scmp.eq.s32.totalorder %s16, 0
    %p93 = por %p91, %p92
    %p94 = scmp.ne.s32.totalorder %s82, %s83
    %p95 = scmp.eq.s32.totalorder %s17, 1
    %p96 = por %p94, %p95
    %p98 = scmp.ne.s32.totalorder %s83, %s97
    %p99 = scmp.eq.s32.totalorder %s17, 0
    %p100 = por %p98, %p99
    %s102 = sadd.s32 %s101, 1
    %p105 = scmp.eq.s32.totalorder %s11, 1
    %p106 = scmp.ne.s32.totalorder %s101, %s103
    %p107 = scmp.eq.s32.totalorder %s11, 0
    %p108 = por %p106, %p107
    %p109 = scmp.ne.s32.totalorder %s101, %s103
    %p110 = scmp.eq.s32.totalorder %s16, 1
    %p111 = por %p109, %p110
    %p112 = scmp.ne.s32.totalorder %s103, %s104
    %p113 = scmp.eq.s32.totalorder %s16, 0
    %p114 = por %p112, %p113
    %p115 = scmp.ne.s32.totalorder %s103, %s104
    %p116 = scmp.eq.s32.totalorder %s17, 1
    %p117 = por %p115, %p116
    %p119 = scmp.ne.s32.totalorder %s104, %s118
    %p120 = scmp.eq.s32.totalorder %s17, 0
    %p121 = por %p119, %p120
    %s123 = sadd.s32 %s122, 1
    %p126 = scmp.eq.s32.totalorder %s11, 1
    %p127 = scmp.ne.s32.totalorder %s122, %s124
    %p128 = scmp.eq.s32.totalorder %s11, 0
    %p129 = por %p127, %p128
    %p130 = scmp.ne.s32.totalorder %s122, %s124
    %p131 = scmp.eq.s32.totalorder %s16, 1
    %p132 = por %p130, %p131
    %p133 = scmp.ne.s32.totalorder %s124, %s125
    %p134 = scmp.eq.s32.totalorder %s16, 0
    %p135 = por %p133, %p134
    %p136 = scmp.ne.s32.totalorder %s124, %s125
    %p137 = scmp.eq.s32.totalorder %s17, 1
    %p138 = por %p136, %p137
    %p140 = scmp.ne.s32.totalorder %s125, %s139
    %p141 = scmp.eq.s32.totalorder %s17, 0
    %p142 = por %p140, %p141
    %s143 = ssub.s32 %s18, %s30
    %p144 = scmp.eq.s32.totalorder %s143, 0
    %s146 = sadd.s32 %s145, 1
    %s147 = scalar_select %p144, %s145, %s146
    %p150 = pneg %p144
    %p151 = scmp.eq.s32.totalorder %s11, 1
    %p152 = por %p150, %p151
    %p153 = scmp.ne.s32.totalorder %s145, %s148
    %p154 = scmp.eq.s32.totalorder %s11, 0
    %p155 = por %p153, %p154
    %p156 = scmp.ne.s32.totalorder %s145, %s148
    %p157 = scmp.eq.s32.totalorder %s16, 1
    %p158 = por %p156, %p157
    %p159 = scmp.ne.s32.totalorder %s148, %s149
    %p160 = scmp.eq.s32.totalorder %s16, 0
    %p161 = por %p159, %p160
    %p162 = scmp.ne.s32.totalorder %s148, %s149
    %p163 = scmp.eq.s32.totalorder %s17, 1
    %p164 = por %p162, %p163
    %p166 = scmp.ne.s32.totalorder %s149, %s165
    %p167 = scmp.eq.s32.totalorder %s17, 0
    %p168 = por %p166, %p167
    %p169 = scmp.le.s32.totalorder 1, %s11
    %p170 = scmp.lt.s32.totalorder %s11, 3
    %p171 = pnand %p169, %p170
    %p172 = pneg %p171
    // Predicated region
    $region9: #{convnet_forward.1} parent=5 // pred_check
      _
    $region10: #{convnet_forward.1} parent=5 // pred_check_branch
      %174 = sbr.rel (%p171) target = $region12
    $region11: #{convnet_forward.1} parent=5 // pred_region
      %s175 = ssub.s32 %s11, 1
      // Predicated region
      $region13: #{convnet_forward.1} parent=11 // pred_check
        %p176 = pneg %p72
      $region14: #{convnet_forward.1} parent=11 // pred_check_branch
        %178 = sbr.rel (%p176) target = $region16
      $region15: #{convnet_forward.1} parent=11 // pred_region
        _
      $region16: #{convnet_forward.1} parent=11 // pred_fallthru
        _
      // Predicated region
      $region17: #{convnet_forward.1} parent=11 // pred_check
        %p179 = pneg %p93
      $region18: #{convnet_forward.1} parent=11 // pred_check_branch
        %181 = sbr.rel (%p179) target = $region20
      $region19: #{convnet_forward.1} parent=11 // pred_region
        _
      $region20: #{convnet_forward.1} parent=11 // pred_fallthru
        _
      // Predicated region
      $region21: #{convnet_forward.1} parent=11 // pred_check
        %p182 = pneg %p114
      $region22: #{convnet_forward.1} parent=11 // pred_check_branch
        %184 = sbr.rel (%p182) target = $region24
      $region23: #{convnet_forward.1} parent=11 // pred_region
        _
      $region24: #{convnet_forward.1} parent=11 // pred_fallthru
        _
      // Predicated region
      $region25: #{convnet_forward.1} parent=11 // pred_check
        %p185 = pneg %p135
      $region26: #{convnet_forward.1} parent=11 // pred_check_branch
        %187 = sbr.rel (%p185) target = $region28
      $region27: #{convnet_forward.1} parent=11 // pred_region
        _
      $region28: #{convnet_forward.1} parent=11 // pred_fallthru
        _
    $region12: #{convnet_forward.1} parent=5 // pred_fallthru
      _
    %p188 = scmp.lt.s32.totalorder %s11, 2
    // Predicated region
    $region29: #{convnet_forward.1} parent=5 // pred_check
      %p189 = pneg %p188
    $region30: #{convnet_forward.1} parent=5 // pred_check_branch
      %191 = sbr.rel (%p189) target = $region32
    $region31: #{convnet_forward.1} parent=5 // pred_region
      // Predicated region
      $region33: #{convnet_forward.1} parent=31 // pred_check
        %p192 = pneg %p45
      $region34: #{convnet_forward.1} parent=31 // pred_check_branch
        %194 = sbr.rel (%p192) target = $region36
      $region35: #{convnet_forward.1} parent=31 // pred_region
        %s195 = smul.u32 8, %s18
        %p196 = scmp.lt.s32.totalorder %s195, 15
        %s197 = scalar_select %p196, %s195, 15
        %p198 = scmp.lt.s32.totalorder %s19, 0
        %s199 = scalar_select %p198, %s19, 0
        %s200 = sadd.s32 %s199, %s197
        %s201 = smul.addr %s200, 4
        %s202 = scalar_lea.vmem %s0, %s201
        %s203 = smul.u32 8, %s18
      $region36: #{convnet_forward.1} parent=31 // pred_fallthru
        _
    $region32: #{convnet_forward.1} parent=5 // pred_fallthru
      _
    %p204 = scmp.le.s32.totalorder 1, %s11
    %p205 = scmp.lt.s32.totalorder %s11, 3
    %p206 = pnand %p204, %p205
    %p207 = pneg %p206
    // Predicated region
    $region37: #{convnet_forward.1} parent=5 // pred_check
      _
    $region38: #{convnet_forward.1} parent=5 // pred_check_branch
      %209 = sbr.rel (%p206) target = $region40
    $region39: #{convnet_forward.1} parent=5 // pred_region
      %s210 = ssub.s32 %s11, 1
      %s211 = smul.u32 8, %s20
      %p212 = scmp.lt.s32.totalorder %s211, 15
      %s213 = scalar_select %p212, %s211, 15
      %p214 = scmp.lt.s32.totalorder %s21, 0
      %s215 = scalar_select %p214, %s21, 0
      %s216 = sadd.s32 %s215, %s213
      %s217 = smul.addr %s216, 4
      %s218 = scalar_lea.vmem %s0, %s217
      %p219 = pneg %p51
      %p220 = pneg %p48
      %p221 = pneg %p72
      %p222 = pneg %p69
      %p223 = pneg %p93
      %p224 = pneg %p90
      %p225 = pneg %p114
      %p226 = pneg %p111
      %p227 = pneg %p135
      %p228 = pneg %p132
      %p229 = pneg %p161
      %p230 = pneg %p158
      %p231 = scmp.lt.s32.totalorder %s20, 1
      %s232 = scalar_select %p231, %s20, 1
      %s233 = smul.addr %s232, 8
      %s234 = scalar_lea.vmem %s5, %s233
      %s235 = smul.u32 8, %s20
      %p236 = scmp.lt.s32.totalorder %s235, 15
      %s237 = scalar_select %p236, %s235, 15
      %p238 = scmp.lt.s32.totalorder %s21, 0
      %s239 = scalar_select %p238, %s21, 0
      %s240 = sadd.s32 %s239, %s237
      %s241 = smul.addr %s240, 4
      %s242 = scalar_lea.vmem %s0, %s241
      %s243 = smul.u32 8, %s20
      %p244 = scmp.lt.s32.totalorder %s20, 1
      %s245 = scalar_select %p244, %s20, 1
      %s246 = smul.addr %s245, 8
      %s247 = scalar_lea.vmem %s5, %s246
      %p249 = scmp.eq.s32.totalorder %s21, 0
      // Predicated region
      $region41: #{convnet_forward.1} parent=39 // pred_check
        %p250 = pneg %p249
      $region42: #{convnet_forward.1} parent=39 // pred_check_branch
        %252 = sbr.rel (%p250) target = $region44
      $region43: #{convnet_forward.1} parent=39 // pred_region
        %vm253 = vcmask 261120
        %254 = vst.msk [vmem:[#allocation2] sm:$0xff] %vm253, -inf
      $region44: #{convnet_forward.1} parent=39 // pred_fallthru
        _
      %v255 = vld [vmem:[%s242] sm:$0xf]
      %v256 = vld [vmem:[%s242 + $0x4] sm:$0xf]
      %v257 = vld [vmem:[%s242 + $0x8] sm:$0xf]
      %v258 = vld [vmem:[%s242 + $0xc] sm:$0xf]
      %v259 = vld [vmem:[%s242 + $0x10] sm:$0xf]
      %v260 = vld [vmem:[%s242 + $0x14] sm:$0xf]
      %v261 = vld [vmem:[%s242 + $0x18] sm:$0xf]
      %v262 = vld [vmem:[%s242 + $0x1c] sm:$0xf]
      %v263 = vld [vmem:[%s1] sm:$0x3]
      %v264 = vld [vmem:[%s1 + $0x2] sm:$0x3]
      %v265 = vld [vmem:[%s1 + $0x4] sm:$0x3]
      %v274 = vunpack.c.l.b16 %v255
      %v275 = vunpack.c.l.b16 %v256
      %v276 = vunpack.c.l.b16 %v257
      %v277 = vunpack.c.l.b16 %v258
      %v278 = vunpack.c.l.b16 %v259
      %v279 = vunpack.c.l.b16 %v260
      %v280 = vunpack.c.l.b16 %v261
      %v281 = vunpack.c.l.b16 %v262
      %v282 = vpack.c.b16 %v275, %v274
      %v283 = vpack.c.b16 %v277, %v276
      %v284 = vpack.c.b16 %v279, %v278
      %v285 = vpack.c.b16 %v281, %v280
      %vm286 = vcmask 31744
      %v288 = vsel %vm286, %v282, 0
      %v291 = vsel %vm286, %v283, 0
      %v294 = vsel %vm286, %v284, 0
      %v297 = vsel %vm286, %v285, 0
      %vm299 = vcmask 1041408
      %v301 = vsel %vm299, %v263, 0
      %303 = vmatpush.bf16.msra.mxu0 0
      %304 = vmatpush.bf16.msra.mxu0 0
      %305 = vmatpush.bf16.msra.mxu0 0
      %306 = vmatpush.bf16.msra.mxu0 0
      %307 = vmatpush.bf16.msra.mxu0 0
      %308 = vmatpush.bf16.msra.mxu0 0
      %309 = vmatpush.bf16.msra.mxu0 0
      %310 = vmatpush.bf16.msra.mxu0 %v301
      %311 = vmatmul.bf16.gmra.mxu0 %v288
      %v312 = vpop.f32.mrf.mxu0
      %v313 = vadd.f32 0.0, %v312
      %v314 = vpop.f32.mrf.mxu0
      %v315 = vadd.f32 0.0, %v314
      %316 = vmatmul.bf16.gmra.mxu0 %v291
      %v317 = vpop.f32.mrf.mxu0
      %v318 = vadd.f32 0.0, %v317
      %v319 = vpop.f32.mrf.mxu0
      %v320 = vadd.f32 0.0, %v319
      %321 = vmatmul.bf16.gmra.mxu0 %v294
      %v322 = vpop.f32.mrf.mxu0
      %v323 = vadd.f32 0.0, %v322
      %v324 = vpop.f32.mrf.mxu0
      %v325 = vadd.f32 0.0, %v324
      %326 = vmatmul.bf16.gmra.mxu0 %v297
      %v327 = vpop.f32.mrf.mxu0
      %v328 = vadd.f32 0.0, %v327
      %v329 = vpop.f32.mrf.mxu0
      %v330 = vadd.f32 0.0, %v329
      %331 = vdwg.mxu0
      %v333 = vsel %vm299, %v264, 0
      %335 = vmatpush.bf16.msra.mxu0 0
      %336 = vmatpush.bf16.msra.mxu0 0
      %337 = vmatpush.bf16.msra.mxu0 0
      %338 = vmatpush.bf16.msra.mxu0 0
      %339 = vmatpush.bf16.msra.mxu0 0
      %340 = vmatpush.bf16.msra.mxu0 0
      %341 = vmatpush.bf16.msra.mxu0 0
      %342 = vmatpush.bf16.msra.mxu0 %v333
      %343 = vmatmul.bf16.gmra.mxu0 %v288
      %v344 = vpop.f32.mrf.mxu0
      %v345 = vadd.f32 0.0, %v344
      %v346 = vpop.f32.mrf.mxu0
      %v347 = vadd.f32 0.0, %v346
      %348 = vmatmul.bf16.gmra.mxu0 %v291
      %v349 = vpop.f32.mrf.mxu0
      %v350 = vadd.f32 0.0, %v349
      %v351 = vpop.f32.mrf.mxu0
      %v352 = vadd.f32 0.0, %v351
      %353 = vmatmul.bf16.gmra.mxu0 %v294
      %v354 = vpop.f32.mrf.mxu0
      %v355 = vadd.f32 0.0, %v354
      %v356 = vpop.f32.mrf.mxu0
      %v357 = vadd.f32 0.0, %v356
      %358 = vmatmul.bf16.gmra.mxu0 %v297
      %v359 = vpop.f32.mrf.mxu0
      %v360 = vadd.f32 0.0, %v359
      %v361 = vpop.f32.mrf.mxu0
      %v362 = vadd.f32 0.0, %v361
      %363 = vdwg.mxu0
      %v365 = vsel %vm299, %v265, 0
      %367 = vmatpush.bf16.msra.mxu0 0
      %368 = vmatpush.bf16.msra.mxu0 0
      %369 = vmatpush.bf16.msra.mxu0 0
      %370 = vmatpush.bf16.msra.mxu0 0
      %371 = vmatpush.bf16.msra.mxu0 0
      %372 = vmatpush.bf16.msra.mxu0 0
      %373 = vmatpush.bf16.msra.mxu0 0
      %374 = vmatpush.bf16.msra.mxu0 %v365
      %375 = vmatmul.bf16.gmra.mxu0 %v288
      %v376 = vpop.f32.mrf.mxu0
      %v377 = vadd.f32 0.0, %v376
      %v378 = vpop.f32.mrf.mxu0
      %v379 = vadd.f32 0.0, %v378
      %380 = vmatmul.bf16.gmra.mxu0 %v291
      %v381 = vpop.f32.mrf.mxu0
      %v382 = vadd.f32 0.0, %v381
      %v383 = vpop.f32.mrf.mxu0
      %v384 = vadd.f32 0.0, %v383
      %385 = vmatmul.bf16.gmra.mxu0 %v294
      %v386 = vpop.f32.mrf.mxu0
      %v387 = vadd.f32 0.0, %v386
      %v388 = vpop.f32.mrf.mxu0
      %v389 = vadd.f32 0.0, %v388
      %390 = vmatmul.bf16.gmra.mxu0 %v297
      %v391 = vpop.f32.mrf.mxu0
      %v392 = vadd.f32 0.0, %v391
      %v393 = vpop.f32.mrf.mxu0
      %v394 = vadd.f32 0.0, %v393
      %395 = vdwg.mxu0
      %v404 = vrot.slane %v345, 1
      %v405 = vrot.slane %v347, 1
      %v406 = vrot.slane %v350, 1
      %v407 = vrot.slane %v352, 1
      %v408 = vrot.slane %v355, 1
      %v409 = vrot.slane %v357, 1
      %v410 = vrot.slane %v360, 1
      %v411 = vrot.slane %v362, 1
      %v420 = vadd.f32 %v313, %v404
      %v421 = vadd.f32 %v315, %v405
      %v422 = vadd.f32 %v318, %v406
      %v423 = vadd.f32 %v320, %v407
      %v424 = vadd.f32 %v323, %v408
      %v425 = vadd.f32 %v325, %v409
      %v426 = vadd.f32 %v328, %v410
      %v427 = vadd.f32 %v330, %v411
      %v436 = vrot.slane %v377, 2
      %v437 = vrot.slane %v379, 2
      %v438 = vrot.slane %v382, 2
      %v439 = vrot.slane %v384, 2
      %v440 = vrot.slane %v387, 2
      %v441 = vrot.slane %v389, 2
      %v442 = vrot.slane %v392, 2
      %v443 = vrot.slane %v394, 2
      %v452 = vadd.f32 %v420, %v436
      %v453 = vadd.f32 %v421, %v437
      %v454 = vadd.f32 %v422, %v438
      %v455 = vadd.f32 %v423, %v439
      %v456 = vadd.f32 %v424, %v440
      %v457 = vadd.f32 %v425, %v441
      %v458 = vadd.f32 %v426, %v442
      %v459 = vadd.f32 %v427, %v443
      %v460 = vld [vmem:[#allocation2] sm:$0xff]
      %vm461 = vcmask 259072
      %v462 = vsel %vm461, %v452, -inf
      %v463 = vrot.slane %v462, 4
      %v464 = vmax.f32 %v462, %v463
      %v465 = vrot.slane %v464, 2
      %v466 = vmax.f32 %v464, %v465
      %v467 = vrot.slane %v466, 1
      %v468 = vmax.f32 %v466, %v467
      %v469 = vsel %vm461, %v453, -inf
      %v470 = vrot.slane %v469, 4
      %v471 = vmax.f32 %v469, %v470
      %v472 = vrot.slane %v471, 2
      %v473 = vmax.f32 %v471, %v472
      %v474 = vrot.slane %v473, 1
      %v475 = vmax.f32 %v473, %v474
      %v476 = vsel %vm461, %v454, -inf
      %v477 = vrot.slane %v476, 4
      %v478 = vmax.f32 %v476, %v477
      %v479 = vrot.slane %v478, 2
      %v480 = vmax.f32 %v478, %v479
      %v481 = vrot.slane %v480, 1
      %v482 = vmax.f32 %v480, %v481
      %v483 = vsel %vm461, %v455, -inf
      %v484 = vrot.slane %v483, 4
      %v485 = vmax.f32 %v483, %v484
      %v486 = vrot.slane %v485, 2
      %v487 = vmax.f32 %v485, %v486
      %v488 = vrot.slane %v487, 1
      %v489 = vmax.f32 %v487, %v488
      %v490 = vsel %vm461, %v456, -inf
      %v491 = vrot.slane %v490, 4
      %v492 = vmax.f32 %v490, %v491
      %v493 = vrot.slane %v492, 2
      %v494 = vmax.f32 %v492, %v493
      %v495 = vrot.slane %v494, 1
      %v496 = vmax.f32 %v494, %v495
      %v497 = vsel %vm461, %v457, -inf
      %v498 = vrot.slane %v497, 4
      %v499 = vmax.f32 %v497, %v498
      %v500 = vrot.slane %v499, 2
      %v501 = vmax.f32 %v499, %v500
      %v502 = vrot.slane %v501, 1
      %v503 = vmax.f32 %v501, %v502
      %v504 = vsel %vm461, %v458, -inf
      %v505 = vrot.slane %v504, 4
      %v506 = vmax.f32 %v504, %v505
      %v507 = vrot.slane %v506, 2
      %v508 = vmax.f32 %v506, %v507
      %v509 = vrot.slane %v508, 1
      %v510 = vmax.f32 %v508, %v509
      %v511 = vsel %vm461, %v459, -inf
      %v512 = vrot.slane %v511, 4
      %v513 = vmax.f32 %v511, %v512
      %v514 = vrot.slane %v513, 2
      %v515 = vmax.f32 %v513, %v514
      %v516 = vrot.slane %v515, 1
      %v517 = vmax.f32 %v515, %v516
      %vm526 = vcmask 1041409
      %v527 = vsel %vm526, %v475, %v468
      %vm528 = vcmask 1042434
      %v529 = vsel %vm528, %v482, %v527
      %vm530 = vcmask 1043459
      %v531 = vsel %vm530, %v489, %v529
      %vm532 = vcmask 1044484
      %v533 = vsel %vm532, %v496, %v531
      %vm534 = vcmask 1045509
      %v535 = vsel %vm534, %v503, %v533
      %vm536 = vcmask 1046534
      %v537 = vsel %vm536, %v510, %v535
      %vm538 = vcmask 1047559
      %v539 = vsel %vm538, %v517, %v537
      %v541 = vmax.f32 %v460, %v539
      %vm542 = vcmask 261120
      %543 = vst.msk [vmem:[#allocation2] sm:$0xff] %vm542, %v541
      // Predicated region
      $region45: #{convnet_forward.1} parent=39 // pred_check
        %p544 = pneg %p249
      $region46: #{convnet_forward.1} parent=39 // pred_check_branch
        %546 = sbr.rel (%p544) target = $region48
      $region47: #{convnet_forward.1} parent=39 // pred_region
        %v547 = vld [vmem:[#allocation2] sm:$0xff]
        %v548 = vld [vmem:[%s2] sm:$0x1]
        %v550 = vperm.slane %v548, 0
        %v552 = vadd.f32 %v547, %v550
        %v553 = vmax.f32 %v552, 0.0
        %v554 = vld [vmem:[%s3] sm:$0xf]
        %v555 = vld [vmem:[%s3 + $0x4] sm:$0xf]
        %v556 = vld [vmem:[%s3 + $0x8] sm:$0xf]
        %v557 = vld [vmem:[%s3 + $0xc] sm:$0xf]
        %v558 = vunpack.c.l.bf16 %v554
        %v559 = vunpack.c.l.bf16 %v555
        %v560 = vunpack.c.l.bf16 %v556
        %v561 = vunpack.c.l.bf16 %v557
        %v562 = vld [vmem:[%s4] sm:$0x1]
        %v564 = vperm.slane %v562, 0
        %v567 = vsel %vm542, %v553, 0
        %569 = vmatpush.msra.mxu0 0.0
        %570 = vmatpush.msra.mxu0 0.0
        %571 = vmatpush.msra.mxu0 0.0
        %572 = vmatpush.msra.mxu0 0.0
        %573 = vmatpush.msra.mxu0 0.0
        %574 = vmatpush.msra.mxu0 0.0
        %575 = vmatpush.msra.mxu0 0.0
        %576 = vmatpush.msra.mxu0 0.0
        %577 = vmatpush.msra.mxu0 0.0
        %578 = vmatpush.msra.mxu0 0.0
        %579 = vmatpush.msra.mxu0 0.0
        %580 = vmatpush.msra.mxu0 0.0
        %581 = vmatpush.msra.mxu0 %v561
        %582 = vmatpush.msra.mxu0 %v560
        %583 = vmatpush.msra.mxu0 %v559
        %584 = vmatpush.msra.mxu0 %v558
        %585 = vmatmul.f32.gmra.mxu0 %v567
        %v586 = vpop.f32.mrf.mxu0
        %v587 = vadd.f32 %v564, %v586
        %588 = vdwg.mxu0
        %v589 = vxor.u32 %v587, 2147483648
        %v590 = vmul.f32 %v589, 1.442695
        %v591 = vpow.pop %v590
        %v592 = vadd.f32 %v591, 1.0
        %v593 = vrcp.pop %v592
        %v594 = vmul.f32 %v592, %v593
        %v595 = vsub.f32 1.0, %v594
        %v596 = vmul.f32 %v593, %v595
        %v597 = vadd.f32 %v593, %v596
        %vm598 = vweird.f32 %v592
        %vm599 = vweird.f32 %v593
        %vm600 = vmor %vm598, %vm599
        %v601 = vsel %vm600, %v593, %v597
        %v602 = vand.u32 2147483647, %v592
        %vm603 = vcmp.eq.f32.partialorder %v602, 8.507059e+37
        %v604 = vand.u32 %v592, 2147483648
        %v605 = vor.u32 1.1754944e-38, %v604
        %v606 = vsel %vm603, %v605, %v601
        %v607 = vmul.f32 1.0, %v606
        %608 = vst.msk [vmem:[%s247] sm:$0xff] %vm542, %v607
      $region48: #{convnet_forward.1} parent=39 // pred_fallthru
        _
      %p609 = scmp.lt.s32.totalorder %s20, 1
      %s610 = scalar_select %p609, %s20, 1
      %s611 = smul.addr %s610, 8
      %s612 = scalar_lea.vmem %s5, %s611
      // Predicated region
      $region49: #{convnet_forward.1} parent=39 // pred_check
        %p613 = pneg %p158
      $region50: #{convnet_forward.1} parent=39 // pred_check_branch
        %615 = sbr.rel (%p613) target = $region52
      $region51: #{convnet_forward.1} parent=39 // pred_region
        _
      $region52: #{convnet_forward.1} parent=39 // pred_fallthru
        _
    $region40: #{convnet_forward.1} parent=5 // pred_fallthru
      _
    %p616 = scmp.le.s32.totalorder 2, %s11
    // Predicated region
    $region53: #{convnet_forward.1} parent=5 // pred_check
      %p617 = pneg %p616
    $region54: #{convnet_forward.1} parent=5 // pred_check_branch
      %619 = sbr.rel (%p617) target = $region56
    $region55: #{convnet_forward.1} parent=5 // pred_region
      %s620 = ssub.s32 %s11, 2
      // Predicated region
      $region57: #{convnet_forward.1} parent=55 // pred_check
        %p621 = pneg %p164
      $region58: #{convnet_forward.1} parent=55 // pred_check_branch
        %623 = sbr.rel (%p621) target = $region60
      $region59: #{convnet_forward.1} parent=55 // pred_region
        %p624 = scmp.lt.s32.totalorder %s22, 1
        %s625 = scalar_select %p624, %s22, 1
        %s626 = smul.addr %s625, 8
        %s627 = scalar_lea.vmem %s5, %s626
      $region60: #{convnet_forward.1} parent=55 // pred_fallthru
        _
    $region56: #{convnet_forward.1} parent=5 // pred_fallthru
      _
  $region6: #{convnet_forward.1} parent=0 // loop_footer
    %s15 = sadd.s32 1, %s11
  $region7: #{convnet_forward.1} parent=0 // loop_footer_branch
    %10 = sbr.rel target = $region3
  $region8: #{convnet_forward.1} parent=0 // loop_exit
    _

</llo_original>
